<compile_context>
chip_gen: v7x
topology: tpu7x:2x2x1
jax: 0.10.0
libtpu: 0.0.40
codegen_flags: <defaults>
</compile_context>

<pallas_src>
import functools

import jax
import jax.numpy as jnp
from jax.experimental import pallas as pl
from jax.experimental.pallas import tpu as pltpu


def _tpu_generation():
    """Best-effort TPU generation (5 / 6 / 7 ...), or None if unknown."""
    try:
        kind = jax.devices()[0].device_kind.lower()
    except Exception:
        return None
    if "v7" in kind or "tpu7" in kind or "7x" in kind:
        return 7
    for gen in (6, 5, 4, 3, 2):
        if f"v{gen}" in kind:
            return gen
    return None


# ----------------------------------------------------------------------------- kernels


def _log_softmax3_flat_kernel(x_ref, o_ref, *, n_snps, compute_dtype):
    """Log-softmax over the 3-class axis laid out as three lane slices.

    x_ref / o_ref blocks are (TB, 3*n_snps); all slices are lane-aligned
    (n_snps % 128 == 0), so no layout shuffles occur: pure VPU + EUP.
    """
    n = n_snps
    x0 = x_ref[:, 0 * n:1 * n].astype(compute_dtype)
    x1 = x_ref[:, 1 * n:2 * n].astype(compute_dtype)
    x2 = x_ref[:, 2 * n:3 * n].astype(compute_dtype)

    m = jnp.maximum(jnp.maximum(x0, x1), x2)                       # VPU
    # Fused sum-of-exps: avoids materializing three full e-slabs in VMEM.
    s = jnp.exp(x0 - m) + jnp.exp(x1 - m) + jnp.exp(x2 - m)        # EUP + VPU
    lse = jnp.log(s.astype(jnp.float32)) + m.astype(jnp.float32)   # log kept in f32

    dt = o_ref.dtype
    o_ref[:, 0 * n:1 * n] = (x0.astype(jnp.float32) - lse).astype(dt)
    o_ref[:, 1 * n:2 * n] = (x1.astype(jnp.float32) - lse).astype(dt)
    o_ref[:, 2 * n:3 * n] = (x2.astype(jnp.float32) - lse).astype(dt)


def _log_softmax3_cols_kernel(x0_ref, x1_ref, x2_ref, o0_ref, o1_ref, o2_ref,
                              *, compute_dtype):
    """Column-tiled variant: the three refs are (TB, TN) class-column blocks."""
    x0 = x0_ref[...].astype(compute_dtype)
    x1 = x1_ref[...].astype(compute_dtype)
    x2 = x2_ref[...].astype(compute_dtype)

    m = jnp.maximum(jnp.maximum(x0, x1), x2)
    s = jnp.exp(x0 - m) + jnp.exp(x1 - m) + jnp.exp(x2 - m)
    lse = jnp.log(s.astype(jnp.float32)) + m.astype(jnp.float32)

    dt = o0_ref.dtype
    o0_ref[...] = (x0.astype(jnp.float32) - lse).astype(dt)
    o1_ref[...] = (x1.astype(jnp.float32) - lse).astype(dt)
    o2_ref[...] = (x2.astype(jnp.float32) - lse).astype(dt)


# ------------------------------------------------------------------------- pallas_call


@functools.partial(
    jax.jit,
    static_argnames=("n_snps", "target_block_bytes", "vmem_limit_bytes",
                     "core_parallel", "compute_dtype", "alias_input"))
def _reshape_log_softmax_impl(x, *, n_snps, target_block_bytes, vmem_limit_bytes,
                              core_parallel, compute_dtype, alias_input):
    assert n_snps % 128 == 0, (
        "n_snps must be a multiple of 128 for lane-aligned class slices")
    width = 3 * n_snps
    x2d = jnp.reshape(x, (-1, width))      # free row-major view of .view(-1, 3, n)
    b = x2d.shape[0]
    itemsize = x2d.dtype.itemsize
    bytes_per_row = width * itemsize
    tb_min = b if b < 8 else 8             # smallest legal (sublane-aligned) batch tile

    cost = pl.CostEstimate(
        flops=11 * b * n_snps,             # max / sub / add per column (VPU)
        transcendentals=4 * b * n_snps,    # 3 exp + 1 log per column (EUP)
        bytes_accessed=2 * b * width * itemsize,
    )

    if tb_min * bytes_per_row <= target_block_bytes:
        # ---------------- primary path: whole rows, classes = 3 lane slices ----------
        if b <= 8:
            tb = b                                    # full batch dim in one legal block
        else:
            tb = (target_block_bytes // bytes_per_row) // 8 * 8
            # Keep >= ~4 pipeline steps so input-read / compute / output-write overlap
            # (a single grid step would run the three phases serially).
            cap = max(8, ((pl.cdiv(b, 4) + 7) // 8) * 8)
            tb = max(8, min(tb, cap, (b // 8) * 8))
        grid = (pl.cdiv(b, tb),)
        batch_sem = (pltpu.CORE_PARALLEL
                     if (core_parallel and grid[0] >= 2) else pltpu.PARALLEL)

        kernel = functools.partial(_log_softmax3_flat_kernel,
                                   n_snps=n_snps, compute_dtype=compute_dtype)
        out2d = pl.pallas_call(
            kernel,
            out_shape=jax.ShapeDtypeStruct((b, width), x2d.dtype),
            grid=grid,
            in_specs=[pl.BlockSpec((tb, width), lambda i: (i, 0))],
            out_specs=pl.BlockSpec((tb, width), lambda i: (i, 0)),
            input_output_aliases=({0: 0} if alias_input else {}),
            compiler_params=pltpu.CompilerParams(
                dimension_semantics=(batch_sem,),
                vmem_limit_bytes=vmem_limit_bytes),
            cost_estimate=cost,
        )(x2d)
        return jnp.reshape(out2d, (-1, 3, n_snps))

    # ---------------- fallback path: genome-scale n_snps -> tile the lane axis -------
    tb = tb_min
    # Largest column tile (multiple of 128 that divides n_snps) fitting the budget for
    # the three class blocks of one grid step.
    m_units = n_snps // 128
    max_units = max(1, target_block_bytes // (3 * tb * 128 * itemsize))
    best, d = 1, 1
    while d * d <= m_units:
        if m_units % d == 0:
            for cand in (d, m_units // d):
                if cand <= max_units and cand > best:
                    best = cand
        d += 1
    tn = 128 * best
    ncb = n_snps // tn                     # column blocks per class
    grid = (pl.cdiv(b, tb), ncb)
    batch_sem = (pltpu.CORE_PARALLEL
                 if (core_parallel and grid[0] >= 2) else pltpu.PARALLEL)

    def _class_spec(off):
        return pl.BlockSpec((tb, tn), lambda i, j: (i, j + off))

    kernel = functools.partial(_log_softmax3_cols_kernel, compute_dtype=compute_dtype)
    outs = pl.pallas_call(
        kernel,
        out_shape=tuple(jax.ShapeDtypeStruct((b, n_snps), x2d.dtype) for _ in range(3)),
        grid=grid,
        in_specs=[_class_spec(0), _class_spec(ncb), _class_spec(2 * ncb)],
        out_specs=tuple(pl.BlockSpec((tb, tn), lambda i, j: (i, j)) for _ in range(3)),
        compiler_params=pltpu.CompilerParams(
            dimension_semantics=(batch_sem, pltpu.PARALLEL),
            vmem_limit_bytes=vmem_limit_bytes),
        cost_estimate=cost,
    )(x2d, x2d, x2d)
    # TODO(synk): write straight into a (B, 3, n_snps) HBM output via manual DMA
    # (memory_space=pl.ANY) to avoid this extra stack copy on the genome-scale path.
    return jnp.stack(outs, axis=1)


def reshape_log_softmax(x, n_snps, *, target_block_bytes=None, alias_input=False):
    """Pallas equivalent of ReshapeLogSoftmax(n_snps)(x)."""
    gen = _tpu_generation()
    if target_block_bytes is None:
        # v5e/v6e: 128 MiB VMEM -> bigger blocks amortize ~0.35us/step overhead.
        # v7x / unknown: 64 MiB VMEM -> keep blocks <= ~2 MiB.
        target_block_bytes = (6 << 20) if gen in (5, 6) else (2 << 20)
    vmem_limit_bytes = (64 << 20) if gen in (5, 6) else (32 << 20)
    # bf16 math on v6e/v7x (bf16 VPU/EUP); v5e has no bf16 vector path -> promote.
    compute_dtype = (jnp.bfloat16
                     if (x.dtype == jnp.bfloat16 and gen in (6, 7)) else jnp.float32)
    core_parallel = gen is not None and gen >= 7   # shard the batch loop over both TCs

    kwargs = dict(n_snps=int(n_snps),
                  target_block_bytes=int(target_block_bytes),
                  vmem_limit_bytes=int(vmem_limit_bytes),
                  compute_dtype=compute_dtype,
                  alias_input=bool(alias_input))
    try:
        out = _reshape_log_softmax_impl(x, core_parallel=core_parallel, **kwargs)
        if core_parallel:
            jax.block_until_ready(out)   # surface any CORE_PARALLEL issue right here
        return out
    except Exception:
        if not core_parallel:
            raise
        # Safety net: retry with plain per-chip semantics.
        return _reshape_log_softmax_impl(x, core_parallel=False, **kwargs)


def _reference(x, n_snps):
    x3 = jnp.reshape(x, (-1, 3, n_snps)).astype(jnp.float32)
    return jax.nn.log_softmax(x3, axis=1)


if __name__ == "__main__":
    key = jax.random.PRNGKey(0)
    k1, k2 = jax.random.split(key)

    # 1) f32, small batch: primary lane-slice path.
    n_snps, batch = 256, 8
    x = jax.random.normal(k1, (batch, 3 * n_snps), dtype=jnp.float32)
    y = jax.block_until_ready(reshape_log_softmax(x, n_snps))
    y_ref = _reference(x, n_snps)
    assert y.shape == (batch, 3, n_snps)
    assert jnp.allclose(y, y_ref, atol=1e-5, rtol=1e-5), "f32 mismatch vs reference"
    assert jnp.allclose(jnp.sum(jnp.exp(y), axis=1), 1.0, atol=1e-5)

    # 2) f32, larger batch: multi-step pipelined grid (>= 4 blocks; CORE_PARALLEL on v7x).
    n2, b2 = 128, 64
    x2 = jax.random.normal(k2, (b2, 3 * n2), dtype=jnp.float32)
    y2 = jax.block_until_ready(reshape_log_softmax(x2, n2))
    assert jnp.allclose(y2, _reference(x2, n2), atol=1e-5, rtol=1e-5), "big-batch mismatch"

    # 3) Forced column-tiled fallback (the genome-scale n_snps code path).
    y3 = jax.block_until_ready(
        reshape_log_softmax(x, n_snps, target_block_bytes=16 * 1024))
    assert jnp.allclose(y3, y_ref, atol=1e-5, rtol=1e-5), "column-tiled mismatch"

    # 4) bf16 I/O (bf16 math on v6e/v7x, f32 math elsewhere).
    x_bf = x.astype(jnp.bfloat16)
    y_bf = jax.block_until_ready(reshape_log_softmax(x_bf, n_snps))
    y_bf_ref = _reference(x_bf, n_snps)
    assert jnp.allclose(y_bf.astype(jnp.float32), y_bf_ref, atol=1e-1, rtol=5e-2)

    # 5) input_output_aliases path (in-place style use inside a larger model).
    y5 = jax.block_until_ready(reshape_log_softmax(x, n_snps, alias_input=True))
    assert jnp.allclose(y5, y_ref, atol=1e-5, rtol=1e-5), "aliased-output mismatch"

    print("KERNEL_OK")
</pallas_src>

<mosaic_0001>
module attributes {stable_mosaic.version = 11 : i64} {
  func.func @_log_softmax3_flat_kernel(%arg0: i32, %arg1: memref<8x768xf32, #tpu.memory_space<vmem>>, %arg2: memref<8x768xf32, #tpu.memory_space<vmem>>) attributes {dimension_semantics = [#tpu.dimension_semantics<parallel>], iteration_bounds = array<i64: 1>, scalar_prefetch = 0 : i64, scratch_operands = 0 : i64, tpu.core_type = #tpu.core_type<tc>, window_params = [{transform_indices = @transform_0, window_bounds = array<i64: 8, 768>}, {transform_indices = @transform_1, window_bounds = array<i64: 8, 768>}]} {
    %c0 = arith.constant 0 : index
    %c0_0 = arith.constant 0 : index
    %0 = vector.load %arg1[%c0, %c0_0] : memref<8x768xf32, #tpu.memory_space<vmem>>, vector<8x256xf32>
    %c0_1 = arith.constant 0 : index
    %c256 = arith.constant 256 : index
    %1 = vector.load %arg1[%c0_1, %c256] : memref<8x768xf32, #tpu.memory_space<vmem>>, vector<8x256xf32>
    %c0_2 = arith.constant 0 : index
    %c512 = arith.constant 512 : index
    %2 = vector.load %arg1[%c0_2, %c512] : memref<8x768xf32, #tpu.memory_space<vmem>>, vector<8x256xf32>
    %3 = arith.maximumf %0, %1 : vector<8x256xf32>
    %4 = arith.maximumf %3, %2 : vector<8x256xf32>
    %5 = arith.subf %0, %4 : vector<8x256xf32>
    %6 = math.exp %5 : vector<8x256xf32>
    %7 = arith.subf %1, %4 : vector<8x256xf32>
    %8 = math.exp %7 : vector<8x256xf32>
    %9 = arith.addf %6, %8 : vector<8x256xf32>
    %10 = arith.subf %2, %4 : vector<8x256xf32>
    %11 = math.exp %10 : vector<8x256xf32>
    %12 = arith.addf %9, %11 : vector<8x256xf32>
    %13 = math.log %12 : vector<8x256xf32>
    %14 = arith.addf %13, %4 : vector<8x256xf32>
    %15 = arith.subf %0, %14 : vector<8x256xf32>
    %c0_3 = arith.constant 0 : index
    %c0_4 = arith.constant 0 : index
    %16 = vector.load %arg2[%c0_3, %c0_4] : memref<8x768xf32, #tpu.memory_space<vmem>>, vector<8x256xf32>
    tpu.vector_store %arg2[%c0_3, %c0_4], %15 {strides = array<i32>} : memref<8x768xf32, #tpu.memory_space<vmem>>, vector<8x256xf32>,
    %17 = arith.subf %1, %14 : vector<8x256xf32>
    %c0_5 = arith.constant 0 : index
    %c256_6 = arith.constant 256 : index
    %18 = vector.load %arg2[%c0_5, %c256_6] : memref<8x768xf32, #tpu.memory_space<vmem>>, vector<8x256xf32>
    tpu.vector_store %arg2[%c0_5, %c256_6], %17 {strides = array<i32>} : memref<8x768xf32, #tpu.memory_space<vmem>>, vector<8x256xf32>,
    %19 = arith.subf %2, %14 : vector<8x256xf32>
    %c0_7 = arith.constant 0 : index
    %c512_8 = arith.constant 512 : index
    %20 = vector.load %arg2[%c0_7, %c512_8] : memref<8x768xf32, #tpu.memory_space<vmem>>, vector<8x256xf32>
    tpu.vector_store %arg2[%c0_7, %c512_8], %19 {strides = array<i32>} : memref<8x768xf32, #tpu.memory_space<vmem>>, vector<8x256xf32>,
    return
  }
  func.func @transform_0(%arg0: i32) -> (i32, i32) {
    %c0_i32 = arith.constant 0 : i32
    %c0_i32_0 = arith.constant 0 : i32
    return %arg0, %c0_i32 : i32, i32
  }
  func.func @transform_1(%arg0: i32) -> (i32, i32) {
    %c0_i32 = arith.constant 0 : i32
    %c0_i32_0 = arith.constant 0 : i32
    return %arg0, %c0_i32 : i32, i32
  }
}

</mosaic_0001>

<llo_original>
// kernel: _reshape_log_softmax_impl.1
$region0: #{_reshape_log_softmax_impl.1}
  #allocation0 [shape = 'u32[]', space=smem, size = 0x4, offset = 0x4, fixed_abs, tag = 'smem constant byte address 0x4 - core index']
  #allocation1 [shape = 'u32[144,128]{1,0:T(1,128)}', space=vmem, size = 0x12000, scoped, tag = 'internal scratch']
  %s0 = inlined_call_operand.hbm [shape: f32[8,768], index: 0, kind: input, shape index: {}]
  %s1 = inlined_call_operand.hbm [shape: f32[8,768], index: 1, kind: output, shape index: {}]
  %s2 = sld [smem:[#allocation0]]
  $region18: #{_reshape_log_softmax_impl.1} parent=0
    _
  %s4 = ssub.s32 1, %s2
  %s5 = scalar_select 0, %s4, %s2
  $region1: #{_reshape_log_softmax_impl.1} parent=0
    #allocation2 [shape = 'u8[24576]{0}', space=vmem, size = 0x6000, scoped, tag = 'input window, operand 0, single buffered']
    #allocation3 [shape = 's32[1]{0}', space=sflag, size = 0x4, scoped, tag = 'scoped memory for _reshape_log_softmax_impl.1']
    #allocation4 [shape = 's32[1]{0}', space=sflag, size = 0x4, scoped, tag = 'scoped memory for _reshape_log_softmax_impl.1']
    #allocation5 [shape = 'u8[24576]{0}', space=vmem, size = 0x6000, scoped, tag = 'output window, operand 0, single buffered']
    %6 = vsyncpa [#allocation3], 0
    %7 = vsyncpa [#allocation4], 0
    // Predicated region
    $region2: #{_reshape_log_softmax_impl.1} parent=1 // pred_check
      _
    $region3: #{_reshape_log_softmax_impl.1} parent=1 // pred_check_branch
      %9 = sbr.rel (0) target = $region5
    $region4: #{_reshape_log_softmax_impl.1} parent=1 // pred_region
      %s11 = ssub.s32 768, 768
      %12 = vsyncadd [#allocation3], %s11
      %s14 = sshll.u32 [#allocation2], 4
      %s15 = int_to_ptr.vmem [resolvable:$true] %s14
      %17 = dma.hbm_to_vmem [thread:$0]  %s0, 768, %s15, [#allocation3]
    $region5: #{_reshape_log_softmax_impl.1} parent=1 // pred_fallthru
      _
    // Predicated region
    $region6: #{_reshape_log_softmax_impl.1} parent=1 // pred_check
      _
    $region7: #{_reshape_log_softmax_impl.1} parent=1 // pred_check_branch
      %19 = sbr.rel (0) target = $region9
    $region8: #{_reshape_log_softmax_impl.1} parent=1 // pred_region
      %20 = dma.done [#allocation3], 768
    $region9: #{_reshape_log_softmax_impl.1} parent=1 // pred_fallthru
      _
    %v21 = vld [vmem:[#allocation2] sm:$0xff]
    %v22 = vld [vmem:[#allocation2 + $0x8] sm:$0xff]
    %v23 = vld [vmem:[#allocation2 + $0x10] sm:$0xff]
    %v24 = vld [vmem:[#allocation2 + $0x18] sm:$0xff]
    %v25 = vld [vmem:[#allocation2 + $0x20] sm:$0xff]
    %v26 = vld [vmem:[#allocation2 + $0x28] sm:$0xff]
    %v27 = vmax.f32 %v21, %v23
    %v28 = vmax.f32 %v22, %v24
    %v29 = vmax.f32 %v27, %v25
    %v30 = vmax.f32 %v28, %v26
    %v31 = vsub.f32 %v21, %v29
    %v32 = vsub.f32 %v22, %v30
    %v33 = vmul.f32 %v31, 1.442695
    %v34 = vpow.pop %v33
    %v35 = vmul.f32 %v32, 1.442695
    %v36 = vpow.pop %v35
    %v37 = vsub.f32 %v23, %v29
    %v38 = vsub.f32 %v24, %v30
    %v39 = vmul.f32 %v37, 1.442695
    %v40 = vpow.pop %v39
    %v41 = vmul.f32 %v38, 1.442695
    %v42 = vpow.pop %v41
    %v43 = vadd.f32 %v34, %v40
    %v44 = vadd.f32 %v36, %v42
    %v45 = vsub.f32 %v25, %v29
    %v46 = vsub.f32 %v26, %v30
    %v47 = vmul.f32 %v45, 1.442695
    %v48 = vpow.pop %v47
    %v49 = vmul.f32 %v46, 1.442695
    %v50 = vpow.pop %v49
    %v51 = vadd.f32 %v43, %v48
    %v52 = vadd.f32 %v44, %v50
    %v53 = vlog2.pop %v51
    %v54 = vmul.f32 %v53, 0.6931472
    %v55 = vlog2.pop %v52
    %v56 = vmul.f32 %v55, 0.6931472
    %v57 = vadd.f32 %v54, %v29
    %v58 = vadd.f32 %v56, %v30
    %v59 = vsub.f32 %v21, %v57
    %v60 = vsub.f32 %v22, %v58
    %61 = vst [vmem:[#allocation5] sm:$0xff] %v59
    %62 = vst [vmem:[#allocation5 + $0x8] sm:$0xff] %v60
    %v63 = vsub.f32 %v23, %v57
    %v64 = vsub.f32 %v24, %v58
    %65 = vst [vmem:[#allocation5 + $0x10] sm:$0xff] %v63
    %66 = vst [vmem:[#allocation5 + $0x18] sm:$0xff] %v64
    %v67 = vsub.f32 %v25, %v57
    %v68 = vsub.f32 %v26, %v58
    %69 = vst [vmem:[#allocation5 + $0x20] sm:$0xff] %v67
    %70 = vst [vmem:[#allocation5 + $0x28] sm:$0xff] %v68
    // Predicated region
    $region10: #{_reshape_log_softmax_impl.1} parent=1 // pred_check
      _
    $region11: #{_reshape_log_softmax_impl.1} parent=1 // pred_check_branch
      %72 = sbr.rel (0) target = $region13
    $region12: #{_reshape_log_softmax_impl.1} parent=1 // pred_region
      %s74 = ssub.s32 768, 768
      %75 = vsyncadd [#allocation4], %s74
      %s77 = sshll.u32 [#allocation5], 4
      %s78 = int_to_ptr.vmem [resolvable:$true] %s77
      %80 = dma.vmem_to_hbm [thread:$0]  %s78, 768, %s1, [#allocation4]
    $region13: #{_reshape_log_softmax_impl.1} parent=1 // pred_fallthru
      _
    // Predicated region
    $region14: #{_reshape_log_softmax_impl.1} parent=1 // pred_check
      _
    $region15: #{_reshape_log_softmax_impl.1} parent=1 // pred_check_branch
      %82 = sbr.rel (0) target = $region17
    $region16: #{_reshape_log_softmax_impl.1} parent=1 // pred_region
      %83 = dma.done [#allocation4], 768
    $region17: #{_reshape_log_softmax_impl.1} parent=1 // pred_fallthru
      _
    %84 = vsyncpa [#allocation3], 1
    %85 = vsyncpa [#allocation4], 1

</llo_original>
